<compile_context>
chip_gen: v7x
topology: tpu7x:2x2x1
jax: 0.10.0
libtpu: 0.0.40
codegen_flags: <defaults>
</compile_context>

<pallas_src>
import math

import jax
import jax.numpy as jnp
from jax.experimental import pallas as pl
from jax.experimental.pallas import tpu as pltpu


_MAX_INFLIGHT_DMAS = 8  # sliding window of outstanding frame copies


def _make_gather_kernel(num_frames: int, window: int):
    """Build the HBM->HBM frame-gather kernel for static (num_frames, window)."""

    def kernel(idx_ref, x_ref, o_ref, sems):
        # idx_ref: (N,) int32 in SMEM (scalar prefetch).
        # x_ref / o_ref: (N, CHW) refs left in place in HBM (pl.ANY).
        # sems:  (window,) DMA semaphores -> up to `window` copies in flight.

        def start(i, slot):
            pltpu.make_async_copy(
                x_ref.at[idx_ref[i]], o_ref.at[i], sems.at[slot]
            ).start()

        def wait(slot):
            # Every copy moves an identically sized slab; the wait descriptor
            # only needs a matching size + semaphore, so row 0 stands in for
            # whichever row this slot actually copied.
            pltpu.make_async_copy(
                x_ref.at[0], o_ref.at[0], sems.at[slot]
            ).wait()

        # Prime the window: issue the first `window` copies.
        @pl.loop(0, window)
        def _(i):
            start(i, i)

        # Steady state: retire the copy that last used this slot, then reuse it.
        @pl.loop(window, num_frames)
        def _(i):
            slot = i % window
            wait(slot)
            start(i, slot)

        # Drain: every slot has exactly one outstanding copy left.
        @pl.loop(0, window)
        def _(slot):
            wait(slot)

    return kernel


def frame_gather_pallas(clip, index_mapping):
    """Gather frames along axis 0: out[i] = clip[index_mapping[i]]."""
    n = clip.shape[0]
    chw = math.prod(clip.shape[1:])
    flat = clip.reshape(n, chw)          # free reshape: frames are contiguous
    index_mapping = index_mapping.astype(jnp.int32)
    window = min(n, _MAX_INFLIGHT_DMAS)

    out_flat = pl.pallas_call(
        _make_gather_kernel(n, window),
        out_shape=jax.ShapeDtypeStruct((n, chw), clip.dtype),
        grid_spec=pltpu.PrefetchScalarGridSpec(
            num_scalar_prefetch=1,
            grid=(1,),
            in_specs=[pl.BlockSpec(memory_space=pl.ANY)],
            out_specs=pl.BlockSpec(memory_space=pl.ANY),
            scratch_shapes=[pltpu.SemaphoreType.DMA((window,))],
        ),
        compiler_params=pltpu.CompilerParams(
            dimension_semantics=("arbitrary",),
        ),
    )(index_mapping, flat)
    return out_flat.reshape(clip.shape)


def make_index_mapping(key, num_frames, p):
    """Exact JAX port of the PyTorch index-mapping construction."""
    swap_mask = jax.random.uniform(key, (num_frames - 1,)) < p
    ar = jnp.arange(num_frames, dtype=jnp.int32)
    idx = ar
    # index_mapping[S]     = index_mapping_copy[S + 1]
    idx = idx.at[: num_frames - 1].set(
        jnp.where(swap_mask, ar[1:], idx[: num_frames - 1])
    )
    # index_mapping[S + 1] = index_mapping_copy[S]
    idx = idx.at[1:].set(
        jnp.where(swap_mask, ar[: num_frames - 1], idx[1:])
    )
    return idx


def random_frame_swap(clip, key, p=0.05):
    """Forward pass of RandomFrameSwap: clip is (N, C, H, W)."""
    index_mapping = make_index_mapping(key, clip.shape[0], p)
    return frame_gather_pallas(clip, index_mapping), index_mapping


if __name__ == "__main__":
    key = jax.random.PRNGKey(0)
    k_data, k_swap = jax.random.split(key)

    N, C, H, W = 8, 4, 16, 16
    clip = jax.random.normal(k_data, (N, C, H, W), dtype=jnp.float32)

    # p=0.5 so the small demo actually exercises swaps (module default 0.05).
    out, index_mapping = random_frame_swap(clip, k_swap, p=0.5)
    out = jax.block_until_ready(out)

    # Pure-JAX reference for the gather (same index_mapping).
    ref = jnp.take(clip, index_mapping, axis=0)
    assert out.shape == clip.shape and out.dtype == clip.dtype
    assert jnp.array_equal(out, ref)

    print("KERNEL_OK")
</pallas_src>

<mosaic_0001>
module attributes {stable_mosaic.version = 11 : i64} {
  func.func @kernel(%arg0: i32, %arg1: memref<8xi32, #tpu.memory_space<smem>>, %arg2: memref<8x1024xf32, #tpu.memory_space<any>>, %arg3: memref<8x1024xf32, #tpu.memory_space<any>>, %arg4: memref<8x!tpu.dma_semaphore, #tpu.memory_space<semaphore_mem>>) attributes {dimension_semantics = [#tpu.dimension_semantics<arbitrary>], iteration_bounds = array<i64: 1>, scalar_prefetch = 1 : i64, scratch_operands = 1 : i64, tpu.core_type = #tpu.core_type<tc>, window_params = [{}, {}]} {
    %c0_i32 = arith.constant 0 : i32
    %c8_i32 = arith.constant 8 : i32
    %0 = arith.addi %c0_i32, %c8_i32 : i32
    %c1_i32 = arith.constant 1 : i32
    scf.for %arg5 = %c0_i32 to %0 step %c1_i32  : i32 {
      %c1_i32_9 = arith.constant 1 : i32
      %3 = arith.muli %arg5, %c1_i32_9 : i32
      %c0_i32_10 = arith.constant 0 : i32
      %4 = arith.addi %c0_i32_10, %3 : i32
      %5 = arith.index_cast %4 : i32 to index
      %6 = memref.load %arg1[%5] : memref<8xi32, #tpu.memory_space<smem>>
      %c0_i32_11 = arith.constant 0 : i32
      %7 = tpu.memref_slice %arg2[%6, %c0_i32_11] : memref<8x1024xf32, #tpu.memory_space<any>> -> memref<1x1024xf32, #tpu.memory_space<any>>
      %8 = tpu.memref_squeeze %7 : memref<1x1024xf32, #tpu.memory_space<any>> -> memref<1024xf32, #tpu.memory_space<any>>
      %c0_i32_12 = arith.constant 0 : i32
      %9 = tpu.memref_slice %arg3[%4, %c0_i32_12] : memref<8x1024xf32, #tpu.memory_space<any>> -> memref<1x1024xf32, #tpu.memory_space<any>>
      %10 = tpu.memref_squeeze %9 : memref<1x1024xf32, #tpu.memory_space<any>> -> memref<1024xf32, #tpu.memory_space<any>>
      %11 = tpu.memref_slice %arg4[%4] : memref<8x!tpu.dma_semaphore, #tpu.memory_space<semaphore_mem>> -> memref<1x!tpu.dma_semaphore, #tpu.memory_space<semaphore_mem>>
      %12 = tpu.memref_squeeze %11 : memref<1x!tpu.dma_semaphore, #tpu.memory_space<semaphore_mem>> -> memref<!tpu.dma_semaphore, #tpu.memory_space<semaphore_mem>>
      tpu.enqueue_dma source(%8 : memref<1024xf32, #tpu.memory_space<any>>) target(%10 : memref<1024xf32, #tpu.memory_space<any>>) target_semaphore(%12 : memref<!tpu.dma_semaphore, #tpu.memory_space<semaphore_mem>>)
    }
    %c8_i32_0 = arith.constant 8 : i32
    %c0_i32_1 = arith.constant 0 : i32
    %c0_i32_2 = arith.constant 0 : i32
    %1 = arith.addi %c0_i32_1, %c0_i32_2 : i32
    %c1_i32_3 = arith.constant 1 : i32
    scf.for %arg5 = %c0_i32_1 to %1 step %c1_i32_3  : i32 {
      %c1_i32_9 = arith.constant 1 : i32
      %3 = arith.muli %arg5, %c1_i32_9 : i32
      %c8_i32_10 = arith.constant 8 : i32
      %4 = arith.addi %c8_i32_10, %3 : i32
      %c8_i32_11 = arith.constant 8 : i32
      %c0_i32_12 = arith.constant 0 : i32
      %5 = arith.cmpi eq, %c8_i32_11, %c0_i32_12 : i32
      %c1_i32_13 = arith.constant 1 : i32
      %6 = arith.select %5, %c1_i32_13, %c8_i32_11 : i32
      %7 = arith.remsi %4, %6 : i32
      %c0_i32_14 = arith.constant 0 : i32
      %8 = arith.cmpi ne, %7, %c0_i32_14 : i32
      %c0_i32_15 = arith.constant 0 : i32
      %9 = arith.cmpi slt, %7, %c0_i32_15 : i32
      %c0_i32_16 = arith.constant 0 : i32
      %10 = arith.cmpi slt, %6, %c0_i32_16 : i32
      %11 = arith.xori %9, %10 : i1
      %12 = arith.andi %11, %8 : i1
      %13 = arith.addi %7, %6 : i32
      %14 = arith.select %12, %13, %7 : i32
      %c0_i32_17 = arith.constant 0 : i32
      %c0_i32_18 = arith.constant 0 : i32
      %c0_i32_19 = arith.constant 0 : i32
      %15 = tpu.memref_slice %arg2[%c0_i32_17, %c0_i32_19] : memref<8x1024xf32, #tpu.memory_space<any>> -> memref<1x1024xf32, #tpu.memory_space<any>>
      %16 = tpu.memref_squeeze %15 : memref<1x1024xf32, #tpu.memory_space<any>> -> memref<1024xf32, #tpu.memory_space<any>>
      %c0_i32_20 = arith.constant 0 : i32
      %17 = tpu.memref_slice %arg3[%c0_i32_18, %c0_i32_20] : memref<8x1024xf32, #tpu.memory_space<any>> -> memref<1x1024xf32, #tpu.memory_space<any>>
      %18 = tpu.memref_squeeze %17 : memref<1x1024xf32, #tpu.memory_space<any>> -> memref<1024xf32, #tpu.memory_space<any>>
      %19 = tpu.memref_slice %arg4[%14] : memref<8x!tpu.dma_semaphore, #tpu.memory_space<semaphore_mem>> -> memref<1x!tpu.dma_semaphore, #tpu.memory_space<semaphore_mem>>
      %20 = tpu.memref_squeeze %19 : memref<1x!tpu.dma_semaphore, #tpu.memory_space<semaphore_mem>> -> memref<!tpu.dma_semaphore, #tpu.memory_space<semaphore_mem>>
      tpu.wait_dma2 semaphore(%20 : memref<!tpu.dma_semaphore, #tpu.memory_space<semaphore_mem>>) src(%16 : memref<1024xf32, #tpu.memory_space<any>>) dst(%18 : memref<1024xf32, #tpu.memory_space<any>>)
      %21 = arith.index_cast %4 : i32 to index
      %22 = memref.load %arg1[%21] : memref<8xi32, #tpu.memory_space<smem>>
      %c0_i32_21 = arith.constant 0 : i32
      %23 = tpu.memref_slice %arg2[%22, %c0_i32_21] : memref<8x1024xf32, #tpu.memory_space<any>> -> memref<1x1024xf32, #tpu.memory_space<any>>
      %24 = tpu.memref_squeeze %23 : memref<1x1024xf32, #tpu.memory_space<any>> -> memref<1024xf32, #tpu.memory_space<any>>
      %c0_i32_22 = arith.constant 0 : i32
      %25 = tpu.memref_slice %arg3[%4, %c0_i32_22] : memref<8x1024xf32, #tpu.memory_space<any>> -> memref<1x1024xf32, #tpu.memory_space<any>>
      %26 = tpu.memref_squeeze %25 : memref<1x1024xf32, #tpu.memory_space<any>> -> memref<1024xf32, #tpu.memory_space<any>>
      %27 = tpu.memref_slice %arg4[%14] : memref<8x!tpu.dma_semaphore, #tpu.memory_space<semaphore_mem>> -> memref<1x!tpu.dma_semaphore, #tpu.memory_space<semaphore_mem>>
      %28 = tpu.memref_squeeze %27 : memref<1x!tpu.dma_semaphore, #tpu.memory_space<semaphore_mem>> -> memref<!tpu.dma_semaphore, #tpu.memory_space<semaphore_mem>>
      tpu.enqueue_dma source(%24 : memref<1024xf32, #tpu.memory_space<any>>) target(%26 : memref<1024xf32, #tpu.memory_space<any>>) target_semaphore(%28 : memref<!tpu.dma_semaphore, #tpu.memory_space<semaphore_mem>>)
    }
    %c0_i32_4 = arith.constant 0 : i32
    %c0_i32_5 = arith.constant 0 : i32
    %c8_i32_6 = arith.constant 8 : i32
    %2 = arith.addi %c0_i32_5, %c8_i32_6 : i32
    %c1_i32_7 = arith.constant 1 : i32
    scf.for %arg5 = %c0_i32_5 to %2 step %c1_i32_7  : i32 {
      %c1_i32_9 = arith.constant 1 : i32
      %3 = arith.muli %arg5, %c1_i32_9 : i32
      %c0_i32_10 = arith.constant 0 : i32
      %4 = arith.addi %c0_i32_10, %3 : i32
      %c0_i32_11 = arith.constant 0 : i32
      %c0_i32_12 = arith.constant 0 : i32
      %c0_i32_13 = arith.constant 0 : i32
      %5 = tpu.memref_slice %arg2[%c0_i32_11, %c0_i32_13] : memref<8x1024xf32, #tpu.memory_space<any>> -> memref<1x1024xf32, #tpu.memory_space<any>>
      %6 = tpu.memref_squeeze %5 : memref<1x1024xf32, #tpu.memory_space<any>> -> memref<1024xf32, #tpu.memory_space<any>>
      %c0_i32_14 = arith.constant 0 : i32
      %7 = tpu.memref_slice %arg3[%c0_i32_12, %c0_i32_14] : memref<8x1024xf32, #tpu.memory_space<any>> -> memref<1x1024xf32, #tpu.memory_space<any>>
      %8 = tpu.memref_squeeze %7 : memref<1x1024xf32, #tpu.memory_space<any>> -> memref<1024xf32, #tpu.memory_space<any>>
      %9 = tpu.memref_slice %arg4[%4] : memref<8x!tpu.dma_semaphore, #tpu.memory_space<semaphore_mem>> -> memref<1x!tpu.dma_semaphore, #tpu.memory_space<semaphore_mem>>
      %10 = tpu.memref_squeeze %9 : memref<1x!tpu.dma_semaphore, #tpu.memory_space<semaphore_mem>> -> memref<!tpu.dma_semaphore, #tpu.memory_space<semaphore_mem>>
      tpu.wait_dma2 semaphore(%10 : memref<!tpu.dma_semaphore, #tpu.memory_space<semaphore_mem>>) src(%6 : memref<1024xf32, #tpu.memory_space<any>>) dst(%8 : memref<1024xf32, #tpu.memory_space<any>>)
    }
    %c8_i32_8 = arith.constant 8 : i32
    return
  }
}

</mosaic_0001>

<llo_original>
// kernel: tpu_custom_call.1
$region0: #{tpu_custom_call.1}
  #allocation0 [shape = 'u32[]', space=smem, size = 0x4, offset = 0x4, fixed_abs, tag = 'smem constant byte address 0x4 - core index']
  #allocation1 [shape = 'u32[144,128]{1,0:T(1,128)}', space=vmem, size = 0x12000, scoped, tag = 'internal scratch']
  #allocation2 [shape = 's32[8]{0}', space=sflag, size = 0x20, scoped, tag = 'scratch operand']
  #allocation3 [shape = 's32[1]{0}', space=sflag, size = 0x4, scoped, tag = 'scoped memory for tpu_custom_call.1']
  #allocation4 [shape = 'u8[512]{0}', space=smem, size = 0x200, scoped, tag = 'prefetched SMEM operand 0']
  #allocation5 [shape = 's32[]', space=sflag, size = 0x4, offset = 0, fixed_abs, tag = 'sflag constant byte address 0x0 - dummy sync flag']
  %s0 = inlined_call_operand.hbm [shape: s32[8], index: 0, kind: input, shape index: {}]
  %s1 = inlined_call_operand.hbm [shape: f32[8,1024], index: 1, kind: input, shape index: {}]
  %s2 = inlined_call_operand.hbm [shape: f32[8,1024], index: 2, kind: output, shape index: {}]
  %s3 = sld [smem:[#allocation0]]
  $region16: #{tpu_custom_call.1} parent=0
    _
  %s5 = ssub.s32 1, %s3
  %s6 = scalar_select 0, %s5, %s3
  %8 = dma.hbm_to_smem %s0, 16, [#allocation4], [#allocation3]
  %9 = dma.done [#allocation3], 16
  %10 = sfence
  loop: start=0, step=1, limit=8
  $region2: #{tpu_custom_call.1} parent=0 // loop_pre_header
    _
  $region3: #{tpu_custom_call.1} parent=0 // loop_header
    %s12 = sphi 0, %s16
    %p13 = scmp.ge.s32.totalorder %s12, 8
  $region4: #{tpu_custom_call.1} parent=0 // loop_header_branch
    %15 = sbr.rel (%p13) target = $region8
  $region5: #{tpu_custom_call.1} parent=0 // loop_body
    #allocation6 [shape = 'u32[3]{0}', space=smem, size = 0xc, scoped, tag = 'DMA stride descriptor']
    %s17 = sld [smem:[#allocation4 + %s12]]
    %s18 = sshrl.u32 %s17, 3
    %s19 = sand.u32 %s17, 7
    %s20 = smul.u32 %s18, 64
    %s21 = sadd.s32 %s19, %s20
    %s22 = smul.addr %s21, 16
    %s23 = scalar_lea.hbm %s1, %s22
    %s24 = sshrl.u32 %s12, 3
    %s25 = sand.u32 %s12, 7
    %s26 = smul.u32 %s24, 64
    %s27 = sadd.s32 %s25, %s26
    %s28 = smul.addr %s27, 16
    %s29 = scalar_lea.hbm %s2, %s28
    %s30 = scalar_lea.sflag [#allocation2], %s12
    %s32 = sshll.u32 1, 14
    %s33 = sxor.u32 4294967295, %s32
    %s36 = sshll.u32 3, 24
    %s37 = sxor.u32 4294967295, %s36
    %s38 = sand.u32 0, %s37
    %s40 = sor.u32 %s38, 0
    %43 = sst [smem:[#allocation6]] 128
    %s44 = scalar_lea.smem [#allocation6], 1
    %45 = sst [smem:[%s44]] 128
    %s46 = scalar_lea.smem [#allocation6], 2
    %47 = sst [smem:[%s46]] 1
    %49 = dma.general %s23, 128, %s29, %s30, [#allocation5], [#allocation6], %s40, 0
  $region6: #{tpu_custom_call.1} parent=0 // loop_footer
    %s16 = sadd.s32 1, %s12
  $region7: #{tpu_custom_call.1} parent=0 // loop_footer_branch
    %11 = sbr.rel target = $region3
  $region8: #{tpu_custom_call.1} parent=0 // loop_exit
    _
  loop: start=0, step=1, limit=8
  $region9: #{tpu_custom_call.1} parent=0 // loop_pre_header
    _
  $region10: #{tpu_custom_call.1} parent=0 // loop_header
    %s51 = sphi 0, %s55
    %p52 = scmp.ge.s32.totalorder %s51, 8
  $region11: #{tpu_custom_call.1} parent=0 // loop_header_branch
    %54 = sbr.rel (%p52) target = $region15
  $region12: #{tpu_custom_call.1} parent=0 // loop_body
    %s56 = scalar_lea.sflag [#allocation2], %s51
    %58 = dma.done %s56, 128
  $region13: #{tpu_custom_call.1} parent=0 // loop_footer
    %s55 = sadd.s32 1, %s51
  $region14: #{tpu_custom_call.1} parent=0 // loop_footer_branch
    %50 = sbr.rel target = $region10
  $region15: #{tpu_custom_call.1} parent=0 // loop_exit
    _
  %59 = vsyncmov [#allocation2]
  %s60 = vpop.sfrf %59
  %p61 = scmp.eq.s32.totalorder %s60, 0
  %p62 = pneg %p61
  %64 = shalt.err (%p62)
  %s65 = scalar_lea.sflag [#allocation2], 1
  %66 = vsyncmov %s65
  %s67 = vpop.sfrf %66
  %p68 = scmp.eq.s32.totalorder %s67, 0
  %p69 = pneg %p68
  %71 = shalt.err (%p69)
  %s72 = scalar_lea.sflag [#allocation2], 2
  %73 = vsyncmov %s72
  %s74 = vpop.sfrf %73
  %p75 = scmp.eq.s32.totalorder %s74, 0
  %p76 = pneg %p75
  %78 = shalt.err (%p76)
  %s79 = scalar_lea.sflag [#allocation2], 3
  %80 = vsyncmov %s79
  %s81 = vpop.sfrf %80
  %p82 = scmp.eq.s32.totalorder %s81, 0
  %p83 = pneg %p82
  %85 = shalt.err (%p83)
  %s86 = scalar_lea.sflag [#allocation2], 4
  %87 = vsyncmov %s86
  %s88 = vpop.sfrf %87
  %p89 = scmp.eq.s32.totalorder %s88, 0
  %p90 = pneg %p89
  %92 = shalt.err (%p90)
  %s93 = scalar_lea.sflag [#allocation2], 5
  %94 = vsyncmov %s93
  %s95 = vpop.sfrf %94
  %p96 = scmp.eq.s32.totalorder %s95, 0
  %p97 = pneg %p96
  %99 = shalt.err (%p97)
  %s100 = scalar_lea.sflag [#allocation2], 6
  %101 = vsyncmov %s100
  %s102 = vpop.sfrf %101
  %p103 = scmp.eq.s32.totalorder %s102, 0
  %p104 = pneg %p103
  %106 = shalt.err (%p104)
  %s107 = scalar_lea.sflag [#allocation2], 7
  %108 = vsyncmov %s107
  %s109 = vpop.sfrf %108
  %p110 = scmp.eq.s32.totalorder %s109, 0
  %p111 = pneg %p110
  %113 = shalt.err (%p111)

</llo_original>
